<compile_context>
chip_gen: v7x
topology: tpu7x:2x2x1
jax: 0.10.0
libtpu: 0.0.40
codegen_flags: <defaults>
</compile_context>

<pallas_src>
import functools

import jax
import jax.numpy as jnp
from jax.experimental import pallas as pl
from jax.experimental.pallas import tpu as pltpu


def _rms_norm_kernel(x_ref, w_ref, o_ref, *, eps, inv_hidden):
    # x_ref: (row_tile, hidden); w_ref: (1, hidden) in its native dtype.
    x = x_ref[...].astype(jnp.float32)
    # Lane-axis reduction goes to the XLU; divide folded into a constant mul.
    mean_sq = jnp.sum(x * x, axis=-1, keepdims=True) * inv_hidden
    inv_rms = jax.lax.rsqrt(mean_sq + eps)
    # In-kernel cast of the (1, hidden) weight row rides free VPU slack.
    w = w_ref[...].astype(jnp.float32)
    o_ref[...] = (x * inv_rms * w).astype(o_ref.dtype)


def _chip_vmem_bytes():
    """Physical VMEM per TensorCore; conservative 64 MiB (v7x) if unknown."""
    try:
        info = pltpu.get_tpu_info()
        for attr in ("vmem_capacity_bytes", "vmem_bytes", "vmem_size_bytes"):
            v = getattr(info, attr, None)
            if v:
                return int(v)
    except Exception:
        pass
    return 64 << 20


def _sublane_multiple(dtype):
    # Native sublane packing: 8 rows/vreg for 32-bit, 16 for bf16/f16,
    # 32 for int8/fp8. Keeps loads/stores unmasked, avoids layout cliffs.
    return max(8, 32 // jnp.dtype(dtype).itemsize)


def _tile_footprint_bytes(rows, hidden, itemsize):
    tile = rows * hidden
    return (2 * tile * itemsize      # double-buffered input
            + 2 * tile * itemsize    # double-buffered output
            + 3 * tile * 4           # f32 intermediates
            + hidden * 4)            # resident weight


def _pick_row_tile(n_rows, hidden, dtype, vmem_cap, row_tile=None):
    """Pick a row tile: generation-aware step size, dtype-aware sublane
    rounding, VMEM-fit guard, and >= 8 grid steps when there is enough work."""
    itemsize = jnp.dtype(dtype).itemsize
    sub = _sublane_multiple(dtype)
    small_vmem = vmem_cap <= (64 << 20)        # v7x-class: 64 MiB / TC
    # Input bytes per grid step, and the working-set budget it must fit in.
    target = (8 << 20) if small_vmem else (16 << 20)
    budget = (48 << 20) if small_vmem else (96 << 20)

    if row_tile is None:
        rows = max(sub, (target // max(1, hidden * itemsize) // sub) * sub)
    else:
        rows = max(sub, (int(row_tile) // sub) * sub)

    # VMEM-fit guard: shrink until the double-buffered footprint fits.
    while rows > sub and _tile_footprint_bytes(rows, hidden, itemsize) > budget:
        rows = max(sub, ((rows // 2) // sub) * sub)
    # TODO(synk): for huge hidden where even `sub` rows blow the budget, add a
    # hidden-dim grid axis with a partial-sum accumulator instead of one block.

    # No point in a tile larger than the (sublane-rounded) row count.
    rows = min(rows, pl.cdiv(n_rows, sub) * sub)

    if row_tile is None:
        # Keep >= 8 grid steps when possible so the "parallel" axis shards
        # across both v7x TensorCores and the pipeline has blocks to overlap.
        min_steps = 8
        if n_rows >= min_steps * sub:
            while rows > sub and pl.cdiv(n_rows, rows) < min_steps:
                rows = max(sub, ((rows // 2) // sub) * sub)

    return int(max(sub, rows)), small_vmem


def rms_norm(x, weight=None, eps=1e-6, *, row_tile=None):
    """RMSNorm over the last dim. x: [..., hidden], weight: [hidden] or None."""
    orig_shape = x.shape
    hidden = orig_shape[-1]
    x2d = x.reshape(-1, hidden)
    n_rows = x2d.shape[0]

    if weight is None:  # elementwise_affine=False -> plugin uses ones
        weight = jnp.ones((hidden,), dtype=x.dtype)
    # Native dtype; cast happens in-kernel. (1, hidden) broadcasts over rows.
    w2d = weight.reshape(1, hidden)

    itemsize = jnp.dtype(x.dtype).itemsize
    vmem_cap = _chip_vmem_bytes()
    row_tile, small_vmem = _pick_row_tile(n_rows, hidden, x.dtype, vmem_cap,
                                          row_tile)

    # Ragged last block handled by Pallas (masked writes) -> no pad / slice.
    grid = (pl.cdiv(n_rows, row_tile),)

    est = _tile_footprint_bytes(row_tile, hidden, itemsize)
    # Scoped VMEM: generous on 128 MiB parts, capped with headroom on v7x.
    cap = (56 << 20) if small_vmem else (100 << 20)
    vmem_limit = int(min(max(est + (8 << 20), 32 << 20), cap))

    out = pl.pallas_call(
        functools.partial(_rms_norm_kernel, eps=float(eps),
                          inv_hidden=1.0 / float(hidden)),
        out_shape=jax.ShapeDtypeStruct((n_rows, hidden), x.dtype),
        grid_spec=pltpu.PrefetchScalarGridSpec(
            num_scalar_prefetch=0,
            grid=grid,
            in_specs=[
                pl.BlockSpec((row_tile, hidden), lambda i: (i, 0)),
                pl.BlockSpec((1, hidden), lambda i: (0, 0)),
            ],
            out_specs=pl.BlockSpec((row_tile, hidden), lambda i: (i, 0)),
        ),
        compiler_params=pltpu.CompilerParams(
            # Row blocks are independent -> shard across TCs on v7x megacore.
            dimension_semantics=("parallel",),
            vmem_limit_bytes=vmem_limit),
    )(x2d, w2d)

    return out.reshape(orig_shape)


def _ref_rms_norm(x, weight, eps):
    xf = x.astype(jnp.float32)
    inv = jax.lax.rsqrt(jnp.mean(xf * xf, axis=-1, keepdims=True) + eps)
    return (xf * inv * weight.astype(jnp.float32)).astype(x.dtype)


if __name__ == "__main__":
    # Small shapes consistent with the module: batch=2, seq=8, hidden=32.
    batch, seq, hidden = 2, 8, 32
    eps = 1e-6

    key = jax.random.PRNGKey(0)
    kx, kw, kx2, kx3 = jax.random.split(key, 4)
    x = jax.random.normal(kx, (batch, seq, hidden), dtype=jnp.float32)
    weight = 1.0 + 0.01 * jax.random.normal(kw, (hidden,), dtype=jnp.float32)

    y = rms_norm(x, weight, eps=eps)
    jax.block_until_ready(y)
    ref = _ref_rms_norm(x, weight, eps)
    assert jnp.allclose(y, ref, atol=1e-5, rtol=1e-5), "f32 mismatch"

    # Ragged row count (15 rows) exercises the masked last-block path.
    x2 = jax.random.normal(kx2, (3, 5, hidden), dtype=jnp.float32)
    y2 = rms_norm(x2, weight, eps=eps)
    jax.block_until_ready(y2)
    ref2 = _ref_rms_norm(x2, weight, eps)
    assert jnp.allclose(y2, ref2, atol=1e-5, rtol=1e-5), "ragged mismatch"

    # bf16 path exercises the dtype-aware (16-row) sublane rounding.
    x3 = jax.random.normal(kx3, (2, 16, hidden), dtype=jnp.float32)
    x3_bf16 = x3.astype(jnp.bfloat16)
    w_bf16 = weight.astype(jnp.bfloat16)
    y3 = rms_norm(x3_bf16, w_bf16, eps=eps)
    jax.block_until_ready(y3)
    ref3 = _ref_rms_norm(x3_bf16, w_bf16, eps)
    assert jnp.allclose(y3.astype(jnp.float32), ref3.astype(jnp.float32),
                        atol=2e-2, rtol=2e-2), "bf16 mismatch"

    print("KERNEL_OK")
</pallas_src>

<mosaic_0001>
module attributes {stable_mosaic.version = 11 : i64} {
  func.func @_rms_norm_kernel(%arg0: i32, %arg1: memref<16x32xf32, #tpu.memory_space<vmem>>, %arg2: memref<1x32xf32, #tpu.memory_space<vmem>>, %arg3: memref<16x32xf32, #tpu.memory_space<vmem>>) attributes {dimension_semantics = [#tpu.dimension_semantics<parallel>], iteration_bounds = array<i64: 1>, scalar_prefetch = 0 : i64, scratch_operands = 0 : i64, tpu.core_type = #tpu.core_type<tc>, window_params = [{transform_indices = @transform_0, window_bounds = array<i64: 16, 32>}, {pipeline_mode = #tpu.pipeline_mode<synchronous>, transform_indices = @transform_1, window_bounds = array<i64: 1, 32>}, {transform_indices = @transform_2, window_bounds = array<i64: 16, 32>}]} {
    %c0 = arith.constant 0 : index
    %c0_0 = arith.constant 0 : index
    %0 = vector.load %arg1[%c0, %c0_0] : memref<16x32xf32, #tpu.memory_space<vmem>>, vector<16x32xf32>
    %1 = arith.mulf %0, %0 : vector<16x32xf32>
    %cst = arith.constant dense<0.000000e+00> : vector<16xf32>
    %2 = vector.multi_reduction <add>, %1, %cst [1] : vector<16x32xf32> to vector<16xf32>
    %3 = vector.shape_cast %2 : vector<16xf32> to vector<16x1xf32>
    %cst_1 = arith.constant 3.125000e-02 : f32
    %4 = vector.broadcast %cst_1 : f32 to vector<16x1xf32>
    %5 = arith.mulf %3, %4 : vector<16x1xf32>
    %cst_2 = arith.constant 9.99999997E-7 : f32
    %6 = vector.broadcast %cst_2 : f32 to vector<16x1xf32>
    %7 = arith.addf %5, %6 : vector<16x1xf32>
    %8 = math.rsqrt %7 : vector<16x1xf32>
    %c0_3 = arith.constant 0 : index
    %c0_4 = arith.constant 0 : index
    %9 = vector.load %arg2[%c0_3, %c0_4] : memref<1x32xf32, #tpu.memory_space<vmem>>, vector<1x32xf32>
    %10 = vector.broadcast %8 : vector<16x1xf32> to vector<16x32xf32>
    %11 = arith.mulf %0, %10 : vector<16x32xf32>
    %12 = vector.broadcast %9 : vector<1x32xf32> to vector<16x32xf32>
    %13 = arith.mulf %11, %12 : vector<16x32xf32>
    %c0_5 = arith.constant 0 : index
    %c0_6 = arith.constant 0 : index
    %14 = vector.load %arg3[%c0_5, %c0_6] : memref<16x32xf32, #tpu.memory_space<vmem>>, vector<16x32xf32>
    tpu.vector_store %arg3[%c0_5, %c0_6], %13 {strides = array<i32>} : memref<16x32xf32, #tpu.memory_space<vmem>>, vector<16x32xf32>,
    return
  }
  func.func @transform_0(%arg0: i32) -> (i32, i32) {
    %c0_i32 = arith.constant 0 : i32
    %c0_i32_0 = arith.constant 0 : i32
    return %arg0, %c0_i32 : i32, i32
  }
  func.func @transform_1(%arg0: i32) -> (i32, i32) {
    %c0_i32 = arith.constant 0 : i32
    %c0_i32_0 = arith.constant 0 : i32
    %c0_i32_1 = arith.constant 0 : i32
    return %c0_i32, %c0_i32_0 : i32, i32
  }
  func.func @transform_2(%arg0: i32) -> (i32, i32) {
    %c0_i32 = arith.constant 0 : i32
    %c0_i32_0 = arith.constant 0 : i32
    return %arg0, %c0_i32 : i32, i32
  }
}

</mosaic_0001>

<llo_original>
// kernel: tpu_custom_call.1
$region0: #{tpu_custom_call.1}
  #allocation0 [shape = 'u32[]', space=smem, size = 0x4, offset = 0x4, fixed_abs, tag = 'smem constant byte address 0x4 - core index']
  #allocation1 [shape = 'u32[144,128]{1,0:T(1,128)}', space=vmem, size = 0x12000, scoped, tag = 'internal scratch']
  %s0 = inlined_call_operand.hbm [shape: f32[16,32], index: 0, kind: input, shape index: {}]
  %s1 = inlined_call_operand.vmem [shape: f32[1,32], index: 1, kind: input, shape index: {}]
  %s2 = inlined_call_operand.hbm [shape: f32[16,32], index: 2, kind: output, shape index: {}]
  %s3 = sld [smem:[#allocation0]]
  $region22: #{tpu_custom_call.1} parent=0
    _
  %s5 = ssub.s32 1, %s3
  %s6 = scalar_select 0, %s5, %s3
  $region1: #{tpu_custom_call.1} parent=0
    #allocation2 [shape = 'u8[8192]{0}', space=vmem, size = 0x2000, scoped, tag = 'input window, operand 0, single buffered']
    #allocation3 [shape = 's32[1]{0}', space=sflag, size = 0x4, scoped, tag = 'scoped memory for tpu_custom_call.1']
    #allocation4 [shape = 's32[1]{0}', space=sflag, size = 0x4, scoped, tag = 'scoped memory for tpu_custom_call.1']
    #allocation5 [shape = 'u8[8192]{0}', space=vmem, size = 0x2000, scoped, tag = 'output window, operand 0, single buffered']
    %7 = vsyncpa [#allocation3], 0
    %8 = vsyncpa [#allocation4], 0
    // Predicated region
    $region2: #{tpu_custom_call.1} parent=1 // pred_check
      _
    $region3: #{tpu_custom_call.1} parent=1 // pred_check_branch
      %10 = sbr.rel (0) target = $region5
    $region4: #{tpu_custom_call.1} parent=1 // pred_region
      %s12 = ssub.s32 256, 256
      %13 = vsyncadd [#allocation3], %s12
      %s14 = sshll.u32 [#allocation2], 4
      %s15 = int_to_ptr.vmem [resolvable:$true] %s14
      %20 = dma.hbm_to_vmem [thread:$0]  %s0, 256, %s15, [#allocation3], 128, 128, 8
    $region5: #{tpu_custom_call.1} parent=1 // pred_fallthru
      _
    // Predicated region
    $region6: #{tpu_custom_call.1} parent=1 // pred_check
      _
    $region7: #{tpu_custom_call.1} parent=1 // pred_check_branch
      %22 = sbr.rel (0) target = $region9
    $region8: #{tpu_custom_call.1} parent=1 // pred_region
      _
    $region9: #{tpu_custom_call.1} parent=1 // pred_fallthru
      _
    // Predicated region
    $region10: #{tpu_custom_call.1} parent=1 // pred_check
      _
    $region11: #{tpu_custom_call.1} parent=1 // pred_check_branch
      %24 = sbr.rel (0) target = $region13
    $region12: #{tpu_custom_call.1} parent=1 // pred_region
      %25 = dma.done [#allocation3], 256
    $region13: #{tpu_custom_call.1} parent=1 // pred_fallthru
      _
    %v26 = vld [vmem:[#allocation2] sm:$0xff]
    %v27 = vld [vmem:[#allocation2 + $0x8] sm:$0xff]
    %v28 = vmul.f32 %v26, %v26
    %v29 = vmul.f32 %v27, %v27
    %vm30 = vcmask 261120
    %v31 = vsel %vm30, %v28, 0.0
    %32 = vadd.xlane.f32.xlu0 %v31
    %v33 = vpop.xlane.xlu0 %32
    %v34 = vsel %vm30, %v29, 0.0
    %35 = vadd.xlane.f32.xlu0 %v34
    %v36 = vpop.xlane.xlu0 %35
    %v37 = vmul.f32 %v33, 0.03125
    %v38 = vmul.f32 %v36, 0.03125
    %v39 = vadd.f32 %v37, 1e-06
    %v40 = vadd.f32 %v38, 1e-06
    %v41 = vrsqrt.pop %v39
    %v42 = vrsqrt.pop %v40
    %v43 = vld [vmem:[%s1] sm:$0x1]
    %v44 = vmul.f32 %v26, %v41
    %v45 = vmul.f32 %v27, %v42
    %v47 = vlaneseq
    %v48 = vshrl.u32 %v47, 7
    %v49 = vsub.s32 0, %v48
    %v50 = vrot.slane %v43, %v49
    %v52 = vmul.f32 %v44, %v50
    %v53 = vmul.f32 %v45, %v50
    %54 = vst.msk [vmem:[#allocation5] sm:$0xff] %vm30, %v52
    %55 = vst.msk [vmem:[#allocation5 + $0x8] sm:$0xff] %vm30, %v53
    // Predicated region
    $region14: #{tpu_custom_call.1} parent=1 // pred_check
      _
    $region15: #{tpu_custom_call.1} parent=1 // pred_check_branch
      %57 = sbr.rel (0) target = $region17
    $region16: #{tpu_custom_call.1} parent=1 // pred_region
      %s59 = ssub.s32 256, 256
      %60 = vsyncadd [#allocation4], %s59
      %s61 = sshll.u32 [#allocation5], 4
      %s62 = int_to_ptr.vmem [resolvable:$true] %s61
      %67 = dma.vmem_to_hbm [thread:$0]  %s62, 256, %s2, [#allocation4], 128, 128, 8
    $region17: #{tpu_custom_call.1} parent=1 // pred_fallthru
      _
    // Predicated region
    $region18: #{tpu_custom_call.1} parent=1 // pred_check
      _
    $region19: #{tpu_custom_call.1} parent=1 // pred_check_branch
      %69 = sbr.rel (0) target = $region21
    $region20: #{tpu_custom_call.1} parent=1 // pred_region
      %70 = dma.done [#allocation4], 256
    $region21: #{tpu_custom_call.1} parent=1 // pred_fallthru
      _
    %71 = vsyncpa [#allocation3], 1
    %72 = vsyncpa [#allocation4], 1

</llo_original>
